<compile_context>
chip_gen: v5e
topology: v5e:2x2
jax: 0.10.0
libtpu: 0.0.40
codegen_flags: <defaults>
</compile_context>

<pallas_src>
import math

import jax
import jax.numpy as jnp
from jax.experimental import pallas as pl
from jax.experimental.pallas import tpu as pltpu


# --------------------------------------------------------------------------- #
# small helpers
# --------------------------------------------------------------------------- #
def _round_up(a, m):
    return (a + m - 1) // m * m


def _vmem_capacity_bytes():
    try:
        cap = int(pltpu.get_tpu_info().vmem_capacity_bytes)
        if cap > 0:
            return cap
    except Exception:
        pass
    return 64 * 1024 * 1024  # conservative default (v7x per-TC VMEM)


def _num_tensorcores():
    """Best-effort TensorCore count (1 on v5e/v6e, 2 on v7x).  Defaults to 1."""
    try:
        info = pltpu.get_tpu_info()
        for attr in ("num_cores", "core_count", "tensorcore_count",
                     "num_tensorcores", "cores_per_chip"):
            v = getattr(info, attr, None)
            if isinstance(v, int) and v > 0:
                return v
    except Exception:
        pass
    try:
        v = getattr(jax.devices()[0], "num_cores", None)
        if isinstance(v, int) and v > 0:
            return v
    except Exception:
        pass
    return 1


def _sublane_multiple(*itemsizes):
    # 4-byte dtypes -> 8 sublanes, 2-byte -> 16, 1-byte -> 32 (sub-32-bit packs
    # along sublanes; undersized blocks trigger relayout / masked stores).
    return max(8, 32 // max(1, min(itemsizes)))


def _block_budget(vmem_cap):
    # ~2-8 MiB input blocks: amortizes the ~0.35us per-grid-step overhead while
    # still fitting double-buffered in+out blocks in scoped VMEM on every chip.
    return int(min(8 << 20, max(2 << 20, vmem_cap // 16)))


def _vmem_limit(vmem_cap, per_step_bytes):
    # double-buffered in+out blocks plus headroom, capped below physical.
    return int(min(vmem_cap * 3 // 4, max(32 << 20, 4 * per_step_bytes)))


def _choose_rows_block(rows, bytes_per_row, target, sub, cores):
    """Pick (blk_rows, grid) for tiling `rows`; blk_rows respects sublane `sub`.

    Ragged last blocks are allowed (Pallas masks OOB reads/writes), so `rows`
    is never padded.  On multi-TC chips a single-block grid is split in two and
    odd grids are nudged to even so both cores get balanced work.
    """
    if rows <= sub:
        return int(rows), 1
    cap_rows = (rows // sub) * sub
    blk = max(sub, (target // max(1, bytes_per_row)) // sub * sub)
    blk = min(blk, cap_rows)
    grid = int(pl.cdiv(rows, blk))
    if cores >= 2:
        if grid == 1 and blk >= 2 * sub:
            blk = min(_round_up(pl.cdiv(rows, 2), sub), cap_rows)
            grid = int(pl.cdiv(rows, blk))
        elif grid > 1 and grid % 2 == 1:
            blk2 = min(max(_round_up(pl.cdiv(rows, grid + 1), sub), sub), cap_rows)
            g2 = int(pl.cdiv(rows, blk2))
            if g2 % 2 == 0:
                blk, grid = blk2, g2
    return int(blk), int(grid)


_METADATA_PRIMS = frozenset(
    {"reshape", "squeeze", "expand_dims", "transpose", "copy",
     "broadcast_in_dim", "convert_element_type"}
)

_TRANSCENDENTAL_PRIMS = frozenset(
    {"exp", "exp2", "expm1", "log", "log1p", "tanh", "logistic", "erf", "erfc",
     "erf_inv", "sin", "cos", "rsqrt", "sqrt", "cbrt", "pow", "integer_pow"}
)


# --------------------------------------------------------------------------- #
# PallasLambda
# --------------------------------------------------------------------------- #
class PallasLambda:
    """Pallas-backed equivalent of `Lambda(fn)`: __call__(x) == fn(x).

    `fn` must be expressible with jax/jnp ops (it is traced into the kernel).

    elementwise=True           : fn is a shape-preserving per-element map.
    row_reduce_fn=g            : fn reduces only trailing dims, independently per
                                 leading element; g maps a (rows, T) f32 slab to
                                 (rows, 1) (same values as fn on flattened
                                 trailing dims).  Used when T fits in one block.
    row_reduce_partial=p,
    row_reduce_finalize=f      : sum-combinable decomposition for large T:
                                 p((rows, Tblk) f32) -> (rows, 1) f32 partial
                                 (zero-padded chunks must not change the result),
                                 partials are summed over T-blocks, then
                                 f((rows, 1) f32) -> (rows, 1) final value.
    reduce_t_block=n           : force the tiled-T reduce path with T-block n.
    independent_leading_dims=k : fn is shape-preserving and acts independently
                                 along the first k axes (using negative-axis
                                 indexing for trailing dims), e.g.
                                 softmax(axis=-1); enables a tiled general path.
    Neither flag               : metadata-only fns bypass Pallas; everything else
                                 runs as one whole-array VMEM-resident program.
    """

    def __init__(self, fn, *, elementwise=False, row_reduce_fn=None,
                 row_reduce_partial=None, row_reduce_finalize=None,
                 reduce_t_block=None, independent_leading_dims=None):
        self.fn = fn
        self.elementwise = elementwise
        self.row_reduce_fn = row_reduce_fn
        self.row_reduce_partial = row_reduce_partial
        self.row_reduce_finalize = row_reduce_finalize
        self.reduce_t_block = reduce_t_block
        self.independent_leading_dims = independent_leading_dims
        self._cache = {}  # (shape, dtype) -> (out_sd, is_metadata, n_transcendental)

    # ---------------------------------------------------------------- #
    def _analyze(self, x):
        key = (tuple(x.shape), str(x.dtype))
        hit = self._cache.get(key)
        if hit is not None:
            return hit
        sd = jax.ShapeDtypeStruct(x.shape, x.dtype)
        out_sd = jax.eval_shape(self.fn, sd)
        is_meta, n_trans = False, 0
        try:
            jaxpr = jax.make_jaxpr(self.fn)(sd)
            eqns = jaxpr.jaxpr.eqns
            is_meta = all(e.primitive.name in _METADATA_PRIMS for e in eqns)
            n_trans = sum(1 for e in eqns
                          if e.primitive.name in _TRANSCENDENTAL_PRIMS)
        except Exception:
            pass
        res = (out_sd, is_meta, n_trans)
        self._cache[key] = res
        return res

    # ---------------------------------------------------------------- #
    def __call__(self, x):
        x = jnp.asarray(x)
        out_sd, is_meta, n_trans = self._analyze(x)
        if is_meta:
            # reshape / view / identity: free XLA metadata, no kernel.
            return self.fn(x)
        if self.row_reduce_fn is not None or self.row_reduce_partial is not None:
            return self._call_row_reduce(x, out_sd)
        if self.elementwise:
            return self._call_elementwise(x, out_sd, n_trans)
        if self.independent_leading_dims:
            return self._call_general_leading(x, out_sd, n_trans)
        return self._call_general_whole(x, out_sd, n_trans)

    # ---- elementwise: lane-dense 2-D slab, many rows per block -------- #
    def _call_elementwise(self, x, out_sd, n_trans):
        assert out_sd.shape == x.shape, "elementwise lambda must preserve shape"
        fn = self.fn
        total = int(x.size)
        in_item = x.dtype.itemsize
        out_item = jnp.dtype(out_sd.dtype).itemsize
        sub = _sublane_multiple(in_item, out_item)
        vmem_cap = _vmem_capacity_bytes()
        target = _block_budget(vmem_cap)
        cores = _num_tensorcores()

        pad = 0
        if total % 128 == 0:
            # largest lane-dense width that divides total -> reshape is metadata.
            width = 128
            for w in range(1024, 127, -128):
                if total % w == 0:
                    width = w
                    break
            rows = total // width
            x2 = x.reshape(rows, width)
        else:
            # rare ragged case: pad the flat vector up to a lane multiple.
            width = 128
            rows = int(pl.cdiv(total, width))
            pad = rows * width - total
            x2 = jnp.pad(x.reshape(-1), (0, pad)).reshape(rows, width)

        blk_rows, grid = _choose_rows_block(rows, width * in_item, target, sub, cores)
        per_step = blk_rows * width * (in_item + out_item)

        def kernel(x_ref, o_ref):
            o_ref[...] = fn(x_ref[...]).astype(o_ref.dtype)

        y2 = pl.pallas_call(
            kernel,
            grid=(grid,),
            in_specs=[pl.BlockSpec((blk_rows, width), lambda i: (i, 0))],
            out_specs=pl.BlockSpec((blk_rows, width), lambda i: (i, 0)),
            out_shape=jax.ShapeDtypeStruct((rows, width), out_sd.dtype),
            compiler_params=pltpu.CompilerParams(
                dimension_semantics=("parallel",),
                vmem_limit_bytes=_vmem_limit(vmem_cap, per_step)),
            cost_estimate=pl.CostEstimate(
                flops=2 * total,
                transcendentals=n_trans * total,
                bytes_accessed=(total + pad) * (in_item + out_item)),
        )(x2)
        if pad:
            return y2.reshape(-1)[:total].reshape(out_sd.shape)
        return y2.reshape(out_sd.shape)

    # ---- trailing-dim reduction ---------------------------------------- #
    def _call_row_reduce(self, x, out_sd):
        k = len(out_sd.shape)
        assert k < x.ndim and out_sd.shape == x.shape[:k], (
            "row-reduce mode requires fn to reduce only trailing dims")
        rows = int(math.prod(x.shape[:k])) if k else 1
        t = int(math.prod(x.shape[k:]))
        in_item = x.dtype.itemsize
        out_item = jnp.dtype(out_sd.dtype).itemsize
        sub = _sublane_multiple(4, out_item)  # reduce runs in f32
        vmem_cap = _vmem_capacity_bytes()
        target = _block_budget(vmem_cap)
        cores = _num_tensorcores()

        x2 = x.reshape(rows, t)
        can_tile = (self.row_reduce_partial is not None
                    and self.row_reduce_finalize is not None)
        needs_tile = sub * t * in_item > target
        if can_tile and (self.reduce_t_block is not None or needs_tile):
            return self._row_reduce_tiled(x2, rows, t, out_sd, sub, in_item,
                                          out_item, target, vmem_cap, cores)

        assert self.row_reduce_fn is not None, (
            "provide row_reduce_fn, or row_reduce_partial+finalize for large T")
        rfn = self.row_reduce_fn
        cast_f32 = jnp.issubdtype(x.dtype, jnp.floating) and in_item < 4

        blk_rows, grid = _choose_rows_block(rows, t * in_item, target, sub, cores)
        per_step = blk_rows * (t * in_item + out_item)

        # TODO(synk): pack the (rows, 1) output lane-dense when t is small and
        # rows is huge, to avoid masked vst.msk partial stores per step.
        def kernel(x_ref, o_ref):
            xb = x_ref[...]
            if cast_f32:
                xb = xb.astype(jnp.float32)   # f32 accumulation for bf16/f16
            o_ref[...] = rfn(xb).astype(o_ref.dtype)

        y2 = pl.pallas_call(
            kernel,
            grid=(grid,),
            in_specs=[pl.BlockSpec((blk_rows, t), lambda i: (i, 0))],
            out_specs=pl.BlockSpec((blk_rows, 1), lambda i: (i, 0)),
            out_shape=jax.ShapeDtypeStruct((rows, 1), out_sd.dtype),
            compiler_params=pltpu.CompilerParams(
                dimension_semantics=("parallel",),
                vmem_limit_bytes=_vmem_limit(vmem_cap, per_step)),
            cost_estimate=pl.CostEstimate(
                flops=rows * t, transcendentals=0,
                bytes_accessed=rows * t * in_item + rows * out_item),
        )(x2)
        return y2.reshape(out_sd.shape)

    def _row_reduce_tiled(self, x2, rows, t, out_sd, sub, in_item, out_item,
                          target, vmem_cap, cores):
        partial_fn = self.row_reduce_partial
        finalize_fn = self.row_reduce_finalize

        if rows <= sub:
            blk_rows, grid_r = rows, 1
        else:
            blk_rows = min((rows // sub) * sub, 8 * sub)
            grid_r = int(pl.cdiv(rows, blk_rows))

        t_blk = self.reduce_t_block
        if t_blk is None:
            t_blk = (target // max(1, blk_rows * in_item)) // 128 * 128
        t_blk = max(128, min(int(t_blk) // 128 * 128, _round_up(t, 128)))
        grid_t = int(pl.cdiv(t, t_blk))
        ragged_t = (t % t_blk) != 0

        per_step = blk_rows * t_blk * in_item + blk_rows * (4 + out_item)

        def kernel(x_ref, o_ref, acc_ref):
            kk = pl.program_id(1)

            @pl.when(kk == 0)
            def _():
                acc_ref[...] = jnp.zeros_like(acc_ref)

            xb = x_ref[...].astype(jnp.float32)
            if ragged_t:
                col = jax.lax.broadcasted_iota(jnp.int32, xb.shape, 1) + kk * t_blk
                xb = jnp.where(col < t, xb, 0.0)
            acc_ref[...] += partial_fn(xb)

            @pl.when(kk == pl.num_programs(1) - 1)
            def _():
                o_ref[...] = finalize_fn(acc_ref[...]).astype(o_ref.dtype)

        y2 = pl.pallas_call(
            kernel,
            grid=(grid_r, grid_t),
            in_specs=[pl.BlockSpec((blk_rows, t_blk), lambda i, kk: (i, kk))],
            out_specs=pl.BlockSpec((blk_rows, 1), lambda i, kk: (i, 0)),
            out_shape=jax.ShapeDtypeStruct((rows, 1), out_sd.dtype),
            scratch_shapes=[pltpu.VMEM((blk_rows, 1), jnp.float32)],
            compiler_params=pltpu.CompilerParams(
                dimension_semantics=("parallel", "arbitrary"),
                vmem_limit_bytes=_vmem_limit(vmem_cap, per_step)),
            cost_estimate=pl.CostEstimate(
                flops=rows * t, transcendentals=0,
                bytes_accessed=rows * t * in_item + rows * out_item),
        )(x2)
        return y2.reshape(out_sd.shape)

    # ---- general, independent along leading dims (e.g. softmax(axis=-1)) #
    def _call_general_leading(self, x, out_sd, n_trans):
        k = int(self.independent_leading_dims)
        assert 0 < k < x.ndim
        assert out_sd.shape == x.shape, (
            "independent_leading_dims path requires a shape-preserving fn")
        fn = self.fn
        lead = int(math.prod(x.shape[:k]))
        trail = tuple(x.shape[k:])
        trail_elems = int(math.prod(trail))
        in_item = x.dtype.itemsize
        out_item = jnp.dtype(out_sd.dtype).itemsize
        vmem_cap = _vmem_capacity_bytes()
        target = _block_budget(vmem_cap)
        cores = _num_tensorcores()

        # include ~2 f32 temporaries per element for fn's intermediates (softmax etc.)
        bytes_per_lead = trail_elems * (in_item + out_item + 8)
        sub = _sublane_multiple(in_item, out_item) if len(trail) == 1 else 1
        blk_lead, grid = _choose_rows_block(lead, bytes_per_lead, target, sub, cores)
        per_step = blk_lead * bytes_per_lead
        if 2 * per_step > vmem_cap * 3 // 4:
            # TODO(synk): also tile the trailing dims for very large per-row extents.
            raise NotImplementedError(
                "trailing extent too large for VMEM in the leading-batched path")

        x2 = x.reshape((lead,) + trail)
        block = (blk_lead,) + trail
        n_trail = len(trail)

        def idx_map(i):
            return (i,) + (0,) * n_trail

        def kernel(x_ref, o_ref):
            o_ref[...] = fn(x_ref[...]).astype(o_ref.dtype)

        y2 = pl.pallas_call(
            kernel,
            grid=(grid,),
            in_specs=[pl.BlockSpec(block, idx_map)],
            out_specs=pl.BlockSpec(block, idx_map),
            out_shape=jax.ShapeDtypeStruct((lead,) + trail, out_sd.dtype),
            compiler_params=pltpu.CompilerParams(
                dimension_semantics=("parallel",),
                vmem_limit_bytes=_vmem_limit(vmem_cap, per_step)),
            cost_estimate=pl.CostEstimate(
                flops=4 * int(x.size),
                transcendentals=n_trans * int(x.size),
                bytes_accessed=int(x.size) * (in_item + out_item)),
        )(x2)
        return y2.reshape(out_sd.shape)

    # ---- general fallback: whole array resident in VMEM --------------- #
    def _call_general_whole(self, x, out_sd, n_trans):
        fn = self.fn
        in_item = x.dtype.itemsize
        out_item = jnp.dtype(out_sd.dtype).itemsize
        in_bytes = int(x.size) * in_item
        out_bytes = int(math.prod(out_sd.shape)) * out_item
        temp_bytes = 2 * max(int(x.size), int(math.prod(out_sd.shape))) * 4
        need = in_bytes + out_bytes + temp_bytes

        vmem_cap = _vmem_capacity_bytes()
        if need > vmem_cap // 3:
            # TODO(synk): tile arbitrary (non-elementwise, non-row-reduce,
            # non-leading-independent) lambdas instead of requiring the whole
            # tensor plus temporaries to fit in VMEM.
            raise NotImplementedError(
                "PallasLambda general path needs the tensor (plus temporaries) to "
                "fit in VMEM; use elementwise=True, row_reduce_*, or "
                "independent_leading_dims= for tiled execution.")

        def kernel(x_ref, o_ref):
            o_ref[...] = fn(x_ref[...]).astype(o_ref.dtype)

        return pl.pallas_call(
            kernel,
            out_shape=jax.ShapeDtypeStruct(out_sd.shape, out_sd.dtype),
            in_specs=[pl.BlockSpec(memory_space=pltpu.MemorySpace.VMEM)],
            out_specs=pl.BlockSpec(memory_space=pltpu.MemorySpace.VMEM),
            compiler_params=pltpu.CompilerParams(
                vmem_limit_bytes=int(min(vmem_cap * 3 // 4,
                                         max(32 << 20, 2 * need)))),
            cost_estimate=pl.CostEstimate(
                flops=4 * int(x.size),
                transcendentals=n_trans * int(x.size),
                bytes_accessed=in_bytes + out_bytes),
        )(x)


# --------------------------------------------------------------------------- #
if __name__ == "__main__":
    key = jax.random.PRNGKey(0)
    k0, k1 = jax.random.split(key)
    # NCHW input, matching PyTorch conv-feature-map shapes.
    x = jax.random.normal(k0, (2, 4, 16, 16), dtype=jnp.float32)

    # --- Lambda #1: elementwise activation-style lambda ----------------------
    elt_fn = lambda t: jnp.maximum(t, 0.0) * 2.0 + 1.0
    lam_elt = PallasLambda(elt_fn, elementwise=True)
    y_elt = jax.block_until_ready(lam_elt(x))
    assert y_elt.shape == x.shape
    assert jnp.allclose(y_elt, elt_fn(x), atol=1e-6)
    _ = jax.block_until_ready(lam_elt(x))  # second call hits the analysis cache

    # --- Lambda #2: global average pool, torch `lambda x: x.mean(dim=[2,3])` -
    pool_fn = lambda t: jnp.mean(t, axis=(2, 3))
    lam_pool = PallasLambda(
        pool_fn,
        row_reduce_fn=lambda rowsl: jnp.mean(rowsl, axis=-1, keepdims=True))
    y_pool = jax.block_until_ready(lam_pool(x))
    assert y_pool.shape == (2, 4)
    assert jnp.allclose(y_pool, jnp.mean(x, axis=(2, 3)), atol=1e-5)

    # --- Lambda #2b: same pool via the tiled-T accumulator path --------------
    lam_pool_tiled = PallasLambda(
        pool_fn,
        row_reduce_partial=lambda c: jnp.sum(c, axis=-1, keepdims=True),
        row_reduce_finalize=lambda s: s / float(16 * 16),
        reduce_t_block=128)   # force 2 reduction blocks over T=256
    y_pool_t = jax.block_until_ready(lam_pool_tiled(x))
    assert y_pool_t.shape == (2, 4)
    assert jnp.allclose(y_pool_t, jnp.mean(x, axis=(2, 3)), atol=1e-5)

    # --- Lambda #3: flatten, torch `lambda x: x.view(x.size(0), -1)` ---------
    # Pure metadata -> PallasLambda bypasses the kernel (no HBM round trip).
    lam_flat = PallasLambda(lambda t: t.reshape(t.shape[0], -1))
    y_flat = jax.block_until_ready(lam_flat(x))
    assert y_flat.shape == (2, 4 * 16 * 16)
    assert jnp.allclose(y_flat, x.reshape(2, -1))

    # --- Lambda #4: shape-preserving, independent over leading dims ----------
    sm_fn = lambda t: jax.nn.softmax(t, axis=-1)
    lam_sm = PallasLambda(sm_fn, independent_leading_dims=3)
    y_sm = jax.block_until_ready(lam_sm(x))
    assert y_sm.shape == x.shape
    assert jnp.allclose(y_sm, jax.nn.softmax(x, axis=-1), atol=1e-5)

    # --- Lambda #5: globally-coupled lambda -> whole-array VMEM fallback -----
    x2d = jax.random.normal(k1, (8, 256), dtype=jnp.float32)
    gn_fn = lambda t: t / (jnp.max(jnp.abs(t)) + 1e-6)
    lam_gn = PallasLambda(gn_fn)
    y_gn = jax.block_until_ready(lam_gn(x2d))
    assert y_gn.shape == x2d.shape
    assert jnp.allclose(y_gn, gn_fn(x2d), atol=1e-6)

    print("KERNEL_OK")
</pallas_src>

<mosaic_0001>
module attributes {stable_mosaic.version = 11 : i64} {
  func.func @kernel(%arg0: i32, %arg1: memref<2x1024xf32, #tpu.memory_space<vmem>>, %arg2: memref<2x1024xf32, #tpu.memory_space<vmem>>) attributes {dimension_semantics = [#tpu.dimension_semantics<parallel>], iteration_bounds = array<i64: 1>, scalar_prefetch = 0 : i64, scratch_operands = 0 : i64, tpu.core_type = #tpu.core_type<tc>, window_params = [{transform_indices = @transform_0, window_bounds = array<i64: 2, 1024>}, {transform_indices = @transform_1, window_bounds = array<i64: 2, 1024>}]} {
    %c0 = arith.constant 0 : index
    %c0_0 = arith.constant 0 : index
    %0 = vector.load %arg1[%c0, %c0_0] : memref<2x1024xf32, #tpu.memory_space<vmem>>, vector<2x1024xf32>
    %cst = arith.constant 0.000000e+00 : f32
    %1 = vector.broadcast %cst : f32 to vector<2x1024xf32>
    %2 = arith.maximumf %0, %1 : vector<2x1024xf32>
    %cst_1 = arith.constant 2.000000e+00 : f32
    %3 = vector.broadcast %cst_1 : f32 to vector<2x1024xf32>
    %4 = arith.mulf %2, %3 : vector<2x1024xf32>
    %cst_2 = arith.constant 1.000000e+00 : f32
    %5 = vector.broadcast %cst_2 : f32 to vector<2x1024xf32>
    %6 = arith.addf %4, %5 : vector<2x1024xf32>
    %c0_3 = arith.constant 0 : index
    %c0_4 = arith.constant 0 : index
    %7 = vector.load %arg2[%c0_3, %c0_4] : memref<2x1024xf32, #tpu.memory_space<vmem>>, vector<2x1024xf32>
    tpu.vector_store %arg2[%c0_3, %c0_4], %6 {strides = array<i32>} : memref<2x1024xf32, #tpu.memory_space<vmem>>, vector<2x1024xf32>,
    return
  }
  func.func @transform_0(%arg0: i32) -> (i32, i32) {
    %c0_i32 = arith.constant 0 : i32
    %c0_i32_0 = arith.constant 0 : i32
    return %arg0, %c0_i32 : i32, i32
  }
  func.func @transform_1(%arg0: i32) -> (i32, i32) {
    %c0_i32 = arith.constant 0 : i32
    %c0_i32_0 = arith.constant 0 : i32
    return %arg0, %c0_i32 : i32, i32
  }
}

</mosaic_0001>

<llo_original>
// kernel: tpu_custom_call.1
$region0: #{tpu_custom_call.1}
  #allocation0 [shape = 'u32[]', space=smem, size = 0x4, offset = 0x4, fixed_abs, tag = 'smem constant byte address 0x4 - core index']
  #allocation1 [shape = 'u32[72,128]{1,0:T(1,128)}', space=vmem, size = 0x9000, scoped, tag = 'internal scratch']
  %s0 = inlined_call_operand.hbm [shape: f32[2,1024], index: 0, kind: input, shape index: {}]
  %s1 = inlined_call_operand.hbm [shape: f32[2,1024], index: 1, kind: output, shape index: {}]
  %s2 = sld [smem:[#allocation0]]
  $region18: #{tpu_custom_call.1} parent=0
    _
  %s4 = ssub.s32 1, %s2
  %s5 = scalar_select 0, %s4, %s2
  $region1: #{tpu_custom_call.1} parent=0
    #allocation2 [shape = 'u8[8192]{0}', space=vmem, size = 0x2000, scoped, tag = 'input window, operand 0, single buffered']
    #allocation3 [shape = 's32[1]{0}', space=sflag, size = 0x4, scoped, tag = 'scoped memory for tpu_custom_call.1']
    #allocation4 [shape = 's32[1]{0}', space=sflag, size = 0x4, scoped, tag = 'scoped memory for tpu_custom_call.1']
    #allocation5 [shape = 'u8[8192]{0}', space=vmem, size = 0x2000, scoped, tag = 'output window, operand 0, single buffered']
    %6 = vsyncpa [#allocation3], 0
    %7 = vsyncpa [#allocation4], 0
    // Predicated region
    $region2: #{tpu_custom_call.1} parent=1 // pred_check
      _
    $region3: #{tpu_custom_call.1} parent=1 // pred_check_branch
      %9 = sbr.rel (0) target = $region5
    $region4: #{tpu_custom_call.1} parent=1 // pred_region
      %11 = vsyncadd [#allocation3], 0
      %s13 = sshll.u32 %s0, 4
      %s14 = int_to_ptr.hbm [resolvable:$true] %s13
      %s15 = sshll.u32 [#allocation2], 4
      %s16 = int_to_ptr.vmem [resolvable:$true] %s15
      %18 = dma.hbm_to_vmem [thread:$0]  %s14, 256, %s16, [#allocation3]
    $region5: #{tpu_custom_call.1} parent=1 // pred_fallthru
      _
    // Predicated region
    $region6: #{tpu_custom_call.1} parent=1 // pred_check
      _
    $region7: #{tpu_custom_call.1} parent=1 // pred_check_branch
      %20 = sbr.rel (0) target = $region9
    $region8: #{tpu_custom_call.1} parent=1 // pred_region
      %22 = dma.done [#allocation3], 256
    $region9: #{tpu_custom_call.1} parent=1 // pred_fallthru
      _
    %v23 = vld [vmem:[#allocation2] sm:$0xff]
    %v24 = vld [vmem:[#allocation2 + $0x8] sm:$0xff]
    %v25 = vmax.f32 %v23, 0.0
    %v26 = vmax.f32 %v24, 0.0
    %v27 = vmul.f32 %v25, 2.0
    %v28 = vmul.f32 %v26, 2.0
    %v29 = vadd.f32 %v27, 1.0
    %v30 = vadd.f32 %v28, 1.0
    %31 = vst [vmem:[#allocation5] sm:$0xff] %v29
    %32 = vst [vmem:[#allocation5 + $0x8] sm:$0xff] %v30
    // Predicated region
    $region10: #{tpu_custom_call.1} parent=1 // pred_check
      _
    $region11: #{tpu_custom_call.1} parent=1 // pred_check_branch
      %34 = sbr.rel (0) target = $region13
    $region12: #{tpu_custom_call.1} parent=1 // pred_region
      %36 = vsyncadd [#allocation4], 0
      %s38 = sshll.u32 [#allocation5], 4
      %s39 = int_to_ptr.vmem [resolvable:$true] %s38
      %s40 = sshll.u32 %s1, 4
      %s41 = int_to_ptr.hbm [resolvable:$true] %s40
      %43 = dma.vmem_to_hbm [thread:$0]  %s39, 256, %s41, [#allocation4]
    $region13: #{tpu_custom_call.1} parent=1 // pred_fallthru
      _
    // Predicated region
    $region14: #{tpu_custom_call.1} parent=1 // pred_check
      _
    $region15: #{tpu_custom_call.1} parent=1 // pred_check_branch
      %45 = sbr.rel (0) target = $region17
    $region16: #{tpu_custom_call.1} parent=1 // pred_region
      %47 = dma.done [#allocation4], 256
    $region17: #{tpu_custom_call.1} parent=1 // pred_fallthru
      _
    %48 = vsyncpa [#allocation3], 1
    %49 = vsyncpa [#allocation4], 1

</llo_original>
